<compile_context>
chip_gen: v7x
topology: tpu7x:2x2x1
jax: 0.10.0
libtpu: 0.0.40
codegen_flags: <defaults>
</compile_context>

<pallas_src>
import math

import jax
import jax.numpy as jnp
from jax.experimental import pallas as pl
from jax.experimental.pallas import tpu as pltpu


# ----------------------------- fused Pallas kernel ------------------------------

def _fused_patch_selfconv_kernel(wp_ref, xcol_ref, w1_ref, b1_ref, w2_ref, b2_ref,
                                 out_ref):
    """Self-conv matmul -> wide GEMM -> exact(erf) GELU -> block-diag GEMM, all on-chip.

    wp_ref   : (P, K)         bf16   patches of x[0] (the "conv weights")
    xcol_ref : (K, HP)        bf16   im2col(x[0])^T
    w1_ref   : (HP, 3*F)      bf16   concat of the 3 first-layer weights
    b1_ref   : (1, 3*F)       f32
    w2_ref   : (3*F, O_pad)   bf16   block-diagonal second-layer weights, zero-padded to
                                     a 128-lane multiple
    b2_ref   : (1, O_pad)     f32    zero-padded
    out_ref  : (P, O_pad)     f32    lane-dense store; out[:, t*PP:(t+1)*PP] = ffn_t(hid)
    """
    # (1) per-image "self" convolution as one MXU matmul, fp32 accumulate.
    hid = jnp.dot(wp_ref[...], xcol_ref[...], preferred_element_type=jnp.float32)

    # (2) fused 3-channel FFN: wide GEMM -> exact (erf) GELU -> block-diagonal GEMM.
    z = jnp.dot(hid.astype(w1_ref.dtype), w1_ref[...],
                preferred_element_type=jnp.float32) + b1_ref[...]
    g = 0.5 * z * (1.0 + jax.lax.erf(z * 0.7071067811865476))   # torch.nn.GELU() (erf)
    o = jnp.dot(g.astype(w2_ref.dtype), w2_ref[...],
                preferred_element_type=jnp.float32) + b2_ref[...]
    out_ref[...] = o.astype(out_ref.dtype)


# ------------------------------ module wrapper ------------------------------

class PatchSelfConv:
    """JAX/Pallas port of the PyTorch PatchSelfConv forward pass."""

    def __init__(self, in_channels=3, num_patch_row=4, image_size=16,
                 ffn_dim=64, stride=1, padding=0, dropout=0.0,
                 key=jax.random.PRNGKey(0)):
        assert in_channels == 3, "reference forward only works for in_channels == 3"
        # TODO(synk): the wrapper's unfold/im2col hard-code stride=1, padding=0 (the
        # reference defaults); other values would need a different im2col.
        assert stride == 1 and padding == 0, "only stride=1, padding=0 supported"
        self.in_channels = in_channels
        self.num_patch_row = num_patch_row
        self.image_size = image_size
        self.ffn_dim = ffn_dim
        self.num_patch = num_patch_row ** 2
        self.patch_size = image_size // num_patch_row
        self.patch_pix = self.patch_size ** 2
        self.hid_image_size = math.ceil(
            (image_size + padding * 2 - self.patch_size + 1) / stride)
        self.hid_image_pix = self.hid_image_size ** 2
        self.out3 = 3 * self.patch_pix
        # Lane-dense output width (multiple of 128) so the kernel store is unmasked vst.
        self.out3_pad = max(128, -(-self.out3 // 128) * 128)

        # Deterministic parameter init (synthetic; shapes match the nn.Linear stacks).
        k1, k2, k3, k4, k5 = jax.random.split(key, 5)
        self.W1 = 0.02 * jax.random.normal(k1, (3, self.hid_image_pix, ffn_dim), jnp.float32)
        self.b1 = 0.02 * jax.random.normal(k2, (3, 1, ffn_dim), jnp.float32)
        self.W2 = 0.02 * jax.random.normal(k3, (3, ffn_dim, self.patch_pix), jnp.float32)
        self.b2 = 0.02 * jax.random.normal(k4, (3, 1, self.patch_pix), jnp.float32)
        # Unused-by-forward parameter, kept only for parity with the PyTorch module.
        self.ptwise_param = jax.random.normal(k5, (1, in_channels, image_size), jnp.float32)
        # TODO(synk): patch_split_layer (Conv2d) is never used in forward(); not instantiated.

        # ---- fused FFN parameters (built once) ----
        # W1cat: (hid_pix, 3*ffn)   -> z[:, t*F:(t+1)*F] = hid @ W1[t] + b1[t]
        self.W1cat = (jnp.transpose(self.W1, (1, 0, 2))
                      .reshape(self.hid_image_pix, 3 * ffn_dim)
                      .astype(jnp.bfloat16))
        self.b1cat = self.b1.reshape(1, 3 * ffn_dim)                       # f32
        # W2bd: block-diagonal (3*ffn, out3_pad), zero-padded past out3 for lane density.
        W2bd = jnp.zeros((3 * ffn_dim, self.out3_pad), jnp.float32)
        for t in range(3):
            W2bd = W2bd.at[t * ffn_dim:(t + 1) * ffn_dim,
                           t * self.patch_pix:(t + 1) * self.patch_pix].set(self.W2[t])
        self.W2bd = W2bd.astype(jnp.bfloat16)
        b2cat = jnp.zeros((1, self.out3_pad), jnp.float32)
        self.b2cat = b2cat.at[:, :self.out3].set(self.b2.reshape(1, self.out3))

        # One jitted executable for the whole forward (glue + pallas_call).
        self._forward_jit = jax.jit(self._forward)

    # ---- forward ----
    def _forward(self, x):
        B, C, H, W = x.shape
        ps, npr, npat = self.patch_size, self.num_patch_row, self.num_patch
        hpix, ppix = self.hid_image_pix, self.patch_pix
        K = C * ps * ps
        F3 = 3 * self.ffn_dim
        O3, O3p = self.out3, self.out3_pad

        # Only out_patch[0] is ever consumed by the reference -> compute batch 0 only.
        x0 = x[0]                                                          # (C, H, W)

        # ---- glue: unfold x0 into its own patches (the conv "weights") ----
        wp0 = (x0.reshape(C, npr, ps, npr, ps)
                 .transpose(1, 3, 0, 2, 4)
                 .reshape(npat, K)
                 .astype(jnp.bfloat16))                                    # (P, K)

        # ---- glue: im2col of x0 as a single HLO; channel-major, then (dy, dx) ----
        xcolT0 = jax.lax.conv_general_dilated_patches(
            x0[None], (ps, ps), (1, 1), "VALID",
            dimension_numbers=("NCHW", "OIHW", "NCHW"))[0]                 # (K, hs, hs)
        xcolT0 = xcolT0.reshape(K, hpix).astype(jnp.bfloat16)              # (K, hid_pix)

        # ---- fused Pallas kernel (no grid: whole operands live in VMEM) ----
        cost = pl.CostEstimate(
            flops=2 * (npat * K * hpix + npat * hpix * F3 + npat * F3 * O3p),
            transcendentals=npat * F3,
            bytes_accessed=(npat * K * 2 + K * hpix * 2 + hpix * F3 * 2 + F3 * 4
                            + F3 * O3p * 2 + O3p * 4 + npat * O3p * 4),
        )
        vmem_spec = pl.BlockSpec(memory_space=pltpu.MemorySpace.VMEM)
        out_pad = pl.pallas_call(
            _fused_patch_selfconv_kernel,
            out_shape=jax.ShapeDtypeStruct((npat, O3p), jnp.float32),
            in_specs=[vmem_spec] * 6,
            out_specs=vmem_spec,
            cost_estimate=cost,
        )(wp0, xcolT0, self.W1cat, self.b1cat, self.W2bd, self.b2cat)      # (P, O3p)

        out48 = out_pad[:, :O3]                                            # (P, 3*pp)

        # ---- glue: reassemble patches into an image (= make_grid, padding=0) ----
        op0 = out48.reshape(npat, C, ps, ps)                               # out_patch[0]
        grid_img = (op0.reshape(npr, npr, C, ps, ps)
                       .transpose(2, 0, 3, 1, 4)
                       .reshape(C, H, W))
        return jnp.broadcast_to(grid_img[None], (B, C, H, W))

    def __call__(self, x):
        return self._forward_jit(x)


# --------------------------- pure-JAX reference -----------------------------

def _reference_forward(model, x):
    B, C, H, W = x.shape
    ps, npr, npat = model.patch_size, model.num_patch_row, model.num_patch
    z0 = (x.reshape(B, C, npr, ps, npr, ps)
           .transpose(0, 2, 4, 1, 3, 5)
           .reshape(B, npat, C, ps, ps))

    def conv_one(xi, wi):  # xi: (C,H,W), wi: (P,C,ps,ps)
        return jax.lax.conv_general_dilated(
            xi[None], wi, (1, 1), "VALID",
            dimension_numbers=("NCHW", "OIHW", "NCHW"))[0]                 # (P, hs, hs)

    hid = jax.vmap(conv_one)(x, z0).reshape(B, npat, model.hid_image_pix)

    outs = []
    for t in range(3):
        z = hid @ model.W1[t] + model.b1[t, 0]
        g = jax.nn.gelu(z, approximate=False)
        outs.append(g @ model.W2[t] + model.b2[t, 0])
    out_patch = jnp.stack(outs, axis=1)                                    # (B, 3, P, pp)
    out_patch = out_patch.reshape(B, C, npat, ps, ps).transpose(0, 2, 1, 3, 4)
    op0 = out_patch[0]
    grid_img = op0.reshape(npr, npr, C, ps, ps).transpose(2, 0, 3, 1, 4).reshape(C, H, W)
    return jnp.broadcast_to(grid_img[None], (B, C, H, W))


# ----------------------------------- main -----------------------------------

if __name__ == "__main__":
    key = jax.random.PRNGKey(0)
    kx, kp = jax.random.split(key)

    B, C, IMG = 2, 3, 16
    model = PatchSelfConv(in_channels=C, num_patch_row=4, image_size=IMG,
                          ffn_dim=64, key=kp)

    x = jax.random.normal(kx, (B, C, IMG, IMG), jnp.float32)

    out = model(x)
    out = jax.block_until_ready(out)

    ref = jax.block_until_ready(_reference_forward(model, x))
    assert out.shape == (B, C, IMG, IMG), out.shape
    # bf16 MXU operands with fp32 accumulation -> relaxed tolerance vs. all-fp32 reference;
    # observed error is O(1e-3) at these contraction depths.
    assert jnp.allclose(out, ref, atol=1e-2, rtol=1e-2), float(jnp.max(jnp.abs(out - ref)))

    print("KERNEL_OK")
</pallas_src>

<mosaic_0001>
module attributes {stable_mosaic.version = 11 : i64} {
  func.func @_fused_patch_selfconv_kernel(%arg0: memref<16x48xbf16, #tpu.memory_space<vmem>>, %arg1: memref<48x169xbf16, #tpu.memory_space<vmem>>, %arg2: memref<169x192xbf16, #tpu.memory_space<vmem>>, %arg3: memref<1x192xf32, #tpu.memory_space<vmem>>, %arg4: memref<192x128xbf16, #tpu.memory_space<vmem>>, %arg5: memref<1x128xf32, #tpu.memory_space<vmem>>, %arg6: memref<16x128xf32, #tpu.memory_space<vmem>>) attributes {dimension_semantics = [], scalar_prefetch = 0 : i64, scratch_operands = 0 : i64, tpu.core_type = #tpu.core_type<tc>} {
    %c0 = arith.constant 0 : index
    %c0_0 = arith.constant 0 : index
    %0 = vector.load %arg0[%c0, %c0_0] : memref<16x48xbf16, #tpu.memory_space<vmem>>, vector<16x48xbf16>
    %c0_1 = arith.constant 0 : index
    %c0_2 = arith.constant 0 : index
    %1 = vector.load %arg1[%c0_1, %c0_2] : memref<48x169xbf16, #tpu.memory_space<vmem>>, vector<48x169xbf16>
    %cst = arith.constant dense<0.000000e+00> : vector<16x169xf32>
    %2 = tpu.matmul %0, %1, %cst {dimension_numbers = #tpu.dot_dimension_numbers<[1], [0], [0], [1], [0, 0, 1, 1], [], []>} : vector<16x48xbf16>, vector<48x169xbf16>, vector<16x169xf32> -> vector<16x169xf32>
    %3 = arith.truncf %2 : vector<16x169xf32> to vector<16x169xbf16>
    %c0_3 = arith.constant 0 : index
    %c0_4 = arith.constant 0 : index
    %4 = vector.load %arg2[%c0_3, %c0_4] : memref<169x192xbf16, #tpu.memory_space<vmem>>, vector<169x192xbf16>
    %cst_5 = arith.constant dense<0.000000e+00> : vector<16x192xf32>
    %5 = tpu.matmul %3, %4, %cst_5 {dimension_numbers = #tpu.dot_dimension_numbers<[1], [0], [0], [1], [0, 0, 1, 1], [], []>} : vector<16x169xbf16>, vector<169x192xbf16>, vector<16x192xf32> -> vector<16x192xf32>
    %c0_6 = arith.constant 0 : index
    %c0_7 = arith.constant 0 : index
    %6 = vector.load %arg3[%c0_6, %c0_7] : memref<1x192xf32, #tpu.memory_space<vmem>>, vector<1x192xf32>
    %7 = vector.broadcast %6 : vector<1x192xf32> to vector<16x192xf32>
    %8 = arith.addf %5, %7 : vector<16x192xf32>
    %cst_8 = arith.constant 5.000000e-01 : f32
    %9 = vector.broadcast %cst_8 : f32 to vector<16x192xf32>
    %10 = arith.mulf %9, %8 : vector<16x192xf32>
    %cst_9 = arith.constant 0.707106769 : f32
    %11 = vector.broadcast %cst_9 : f32 to vector<16x192xf32>
    %12 = arith.mulf %8, %11 : vector<16x192xf32>
    %13 = math.erf %12 : vector<16x192xf32>
    %cst_10 = arith.constant 1.000000e+00 : f32
    %14 = vector.broadcast %cst_10 : f32 to vector<16x192xf32>
    %15 = arith.addf %14, %13 : vector<16x192xf32>
    %16 = arith.mulf %10, %15 : vector<16x192xf32>
    %17 = arith.truncf %16 : vector<16x192xf32> to vector<16x192xbf16>
    %c0_11 = arith.constant 0 : index
    %c0_12 = arith.constant 0 : index
    %18 = vector.load %arg4[%c0_11, %c0_12] : memref<192x128xbf16, #tpu.memory_space<vmem>>, vector<192x128xbf16>
    %cst_13 = arith.constant dense<0.000000e+00> : vector<16x128xf32>
    %19 = tpu.matmul %17, %18, %cst_13 {dimension_numbers = #tpu.dot_dimension_numbers<[1], [0], [0], [1], [0, 0, 1, 1], [], []>} : vector<16x192xbf16>, vector<192x128xbf16>, vector<16x128xf32> -> vector<16x128xf32>
    %c0_14 = arith.constant 0 : index
    %c0_15 = arith.constant 0 : index
    %20 = vector.load %arg5[%c0_14, %c0_15] : memref<1x128xf32, #tpu.memory_space<vmem>>, vector<1x128xf32>
    %21 = vector.broadcast %20 : vector<1x128xf32> to vector<16x128xf32>
    %22 = arith.addf %19, %21 : vector<16x128xf32>
    %c0_16 = arith.constant 0 : index
    %c0_17 = arith.constant 0 : index
    %23 = vector.load %arg6[%c0_16, %c0_17] : memref<16x128xf32, #tpu.memory_space<vmem>>, vector<16x128xf32>
    tpu.vector_store %arg6[%c0_16, %c0_17], %22 {strides = array<i32>} : memref<16x128xf32, #tpu.memory_space<vmem>>, vector<16x128xf32>,
    return
  }
}

</mosaic_0001>

<llo_original>
// kernel: _forward.1
$region0: #{_forward.1}
  #allocation0 [shape = 'u32[]', space=smem, size = 0x4, offset = 0x4, fixed_abs, tag = 'smem constant byte address 0x4 - core index']
  #allocation1 [shape = 'u32[144,128]{1,0:T(1,128)}', space=vmem, size = 0x12000, scoped, tag = 'internal scratch']
  %s0 = inlined_call_operand.vmem [shape: bf16[16,48], index: 0, kind: input, shape index: {}]
  %s1 = inlined_call_operand.vmem [shape: bf16[48,169], index: 1, kind: input, shape index: {}]
  %s2 = inlined_call_operand.vmem [shape: bf16[169,192], index: 2, kind: input, shape index: {}]
  %s3 = inlined_call_operand.vmem [shape: f32[1,192], index: 3, kind: input, shape index: {}]
  %s4 = inlined_call_operand.vmem [shape: bf16[192,128], index: 4, kind: input, shape index: {}]
  %s5 = inlined_call_operand.vmem [shape: f32[1,128], index: 5, kind: input, shape index: {}]
  %s6 = inlined_call_operand.vmem [shape: f32[16,128], index: 6, kind: output, shape index: {}]
  %s7 = sld [smem:[#allocation0]]
  $region34: #{_forward.1} parent=0
    _
  %s9 = ssub.s32 1, %s7
  %s10 = scalar_select 0, %s9, %s7
  // Predicated region
  $region2: #{_forward.1} parent=0 // pred_check
    _
  $region3: #{_forward.1} parent=0 // pred_check_branch
    %12 = sbr.rel (0) target = $region5
  $region4: #{_forward.1} parent=0 // pred_region
    _
  $region5: #{_forward.1} parent=0 // pred_fallthru
    _
  // Predicated region
  $region6: #{_forward.1} parent=0 // pred_check
    _
  $region7: #{_forward.1} parent=0 // pred_check_branch
    %14 = sbr.rel (0) target = $region9
  $region8: #{_forward.1} parent=0 // pred_region
    _
  $region9: #{_forward.1} parent=0 // pred_fallthru
    _
  // Predicated region
  $region10: #{_forward.1} parent=0 // pred_check
    _
  $region11: #{_forward.1} parent=0 // pred_check_branch
    %16 = sbr.rel (0) target = $region13
  $region12: #{_forward.1} parent=0 // pred_region
    _
  $region13: #{_forward.1} parent=0 // pred_fallthru
    _
  // Predicated region
  $region14: #{_forward.1} parent=0 // pred_check
    _
  $region15: #{_forward.1} parent=0 // pred_check_branch
    %18 = sbr.rel (0) target = $region17
  $region16: #{_forward.1} parent=0 // pred_region
    _
  $region17: #{_forward.1} parent=0 // pred_fallthru
    _
  // Predicated region
  $region18: #{_forward.1} parent=0 // pred_check
    _
  $region19: #{_forward.1} parent=0 // pred_check_branch
    %20 = sbr.rel (0) target = $region21
  $region20: #{_forward.1} parent=0 // pred_region
    _
  $region21: #{_forward.1} parent=0 // pred_fallthru
    _
  // Predicated region
  $region22: #{_forward.1} parent=0 // pred_check
    _
  $region23: #{_forward.1} parent=0 // pred_check_branch
    %22 = sbr.rel (0) target = $region25
  $region24: #{_forward.1} parent=0 // pred_region
    _
  $region25: #{_forward.1} parent=0 // pred_fallthru
    _
  %v24 = vld [vmem:[%s0] sm:$0xf]
  %v25 = vld [vmem:[%s0 + $0x4] sm:$0xf]
  %v26 = vld [vmem:[%s1] sm:$0xff]
  %v27 = vld [vmem:[%s1 + $0x8] sm:$0xff]
  %v28 = vld [vmem:[%s1 + $0x10] sm:$0xff]
  %v29 = vld [vmem:[%s1 + $0x18] sm:$0xff]
  %v30 = vld [vmem:[%s1 + $0x20] sm:$0xff]
  %v31 = vld [vmem:[%s1 + $0x28] sm:$0xff]
  %v34 = vunpack.c.l.b16 %v24
  %v35 = vunpack.c.l.b16 %v25
  %v36 = vpack.c.b16 %v35, %v34
  %v43 = vunpack.c.l.b16 %v26
  %v44 = vunpack.c.h.b16 %v26
  %v45 = vunpack.c.l.b16 %v27
  %v46 = vunpack.c.h.b16 %v27
  %v47 = vunpack.c.l.b16 %v28
  %v48 = vunpack.c.h.b16 %v28
  %v49 = vunpack.c.l.b16 %v29
  %v50 = vunpack.c.h.b16 %v29
  %v51 = vunpack.c.l.b16 %v30
  %v52 = vunpack.c.h.b16 %v30
  %v53 = vunpack.c.l.b16 %v31
  %v54 = vunpack.c.h.b16 %v31
  %v55 = vpack.c.b16 %v45, %v43
  %v56 = vpack.c.b16 %v46, %v44
  %v57 = vpack.c.b16 %v49, %v47
  %v58 = vpack.c.b16 %v50, %v48
  %v59 = vpack.c.b16 %v53, %v51
  %v60 = vpack.c.b16 %v54, %v52
  %vm67 = vcmask 392192
  %v69 = vsel %vm67, %v36, 0
  %71 = vmatprep.subr.bf16.mxu0 %v56
  %72 = vmatpush1.bf16.msra.mxu0 %v55
  %73 = vmatprep.subr.bf16.mxu0 %v58
  %74 = vmatpush1.bf16.msra.mxu0 %v57
  %75 = vmatprep.subr.bf16.mxu0 %v60
  %76 = vmatpush1.bf16.msra.mxu0 %v59
  %77 = vmatprep.subr.bf16.mxu0 0
  %78 = vmatpush1.bf16.msra.mxu0 0
  %79 = vmatprep.subr.bf16.mxu0 0
  %80 = vmatpush1.bf16.msra.mxu0 0
  %81 = vmatprep.subr.bf16.mxu0 0
  %82 = vmatpush1.bf16.msra.mxu0 0
  %83 = vmatprep.subr.bf16.mxu0 0
  %84 = vmatpush1.bf16.msra.mxu0 0
  %85 = vmatprep.subr.bf16.mxu0 0
  %86 = vmatpush1.bf16.msra.mxu0 0
  %87 = vmatprep.subr.bf16.mxu0 0
  %88 = vmatpush1.bf16.msra.mxu0 0
  %89 = vmatprep.subr.bf16.mxu0 0
  %90 = vmatpush1.bf16.msra.mxu0 0
  %91 = vmatprep.subr.bf16.mxu0 0
  %92 = vmatpush1.bf16.msra.mxu0 0
  %93 = vmatprep.subr.bf16.mxu0 0
  %94 = vmatpush1.bf16.msra.mxu0 0
  %95 = vmatprep.subr.bf16.mxu0 0
  %96 = vmatpush1.bf16.msra.mxu0 0
  %97 = vmatprep.subr.bf16.mxu0 0
  %98 = vmatpush1.bf16.msra.mxu0 0
  %99 = vmatprep.subr.bf16.mxu0 0
  %100 = vmatpush1.bf16.msra.mxu0 0
  %101 = vmatprep.subr.bf16.mxu0 0
  %102 = vmatpush1.bf16.msra.mxu0 0
  %103 = vmatprep.mubr.bf16.mxu0 0
  %104 = vmatmul.mubr.bf16.gmra.mrb[0].mxu0 %v69
  %v105 = vpop.f32.mrb[0].mxu0
  %v106 = vadd.f32 0.0, %v105
  %v107 = vpop.f32.mrb[0].mxu0
  %v108 = vadd.f32 0.0, %v107
  %v109 = vpop.f32.mrb[0].mxu0
  %v110 = vadd.f32 0.0, %v109
  %v111 = vpop.f32.mrb[0].mxu0
  %v112 = vadd.f32 0.0, %v111
  %113 = vdwg.mxu0
  %v114 = vpack.c.bf16 %v110, %v106
  %v115 = vpack.c.bf16 %v112, %v108
  %v116 = vld [vmem:[%s2] sm:$0xff]
  %v117 = vld [vmem:[%s2 + $0x8] sm:$0xff]
  %v118 = vld [vmem:[%s2 + $0x10] sm:$0xff]
  %v119 = vld [vmem:[%s2 + $0x18] sm:$0xff]
  %v120 = vld [vmem:[%s2 + $0x20] sm:$0xff]
  %v121 = vld [vmem:[%s2 + $0x28] sm:$0xff]
  %v122 = vld [vmem:[%s2 + $0x30] sm:$0xff]
  %v123 = vld [vmem:[%s2 + $0x38] sm:$0xff]
  %v124 = vld [vmem:[%s2 + $0x40] sm:$0xff]
  %v125 = vld [vmem:[%s2 + $0x48] sm:$0xff]
  %v126 = vld [vmem:[%s2 + $0x50] sm:$0xff]
  %v127 = vld [vmem:[%s2 + $0x58] sm:$0xff]
  %v128 = vld [vmem:[%s2 + $0x60] sm:$0xff]
  %v129 = vld [vmem:[%s2 + $0x68] sm:$0xff]
  %v130 = vld [vmem:[%s2 + $0x70] sm:$0xff]
  %v131 = vld [vmem:[%s2 + $0x78] sm:$0xff]
  %v132 = vld [vmem:[%s2 + $0x80] sm:$0xff]
  %v133 = vld [vmem:[%s2 + $0x88] sm:$0xff]
  %v134 = vld [vmem:[%s2 + $0x90] sm:$0xff]
  %v135 = vld [vmem:[%s2 + $0x98] sm:$0xff]
  %v136 = vld [vmem:[%s2 + $0xa0] sm:$0xff]
  %v137 = vld [vmem:[%s2 + $0xa8] sm:$0x11]
  %v138 = vld [vmem:[%s3] sm:$0x3]
  %v140 = vlaneseq
  %v141 = vshrl.u32 %v140, 7
  %v142 = vsub.s32 0, %v141
  %v143 = vrot.slane %v138, %v142
  %v144 = vlaneseq
  %v145 = vshrl.u32 %v144, 7
  %v146 = vsub.s32 1, %v145
  %v147 = vrot.slane %v138, %v146
  %v172 = vunpack.c.l.b16 %v116
  %v173 = vunpack.c.h.b16 %v116
  %v174 = vunpack.c.l.b16 %v117
  %v175 = vunpack.c.h.b16 %v117
  %v176 = vunpack.c.l.b16 %v118
  %v177 = vunpack.c.h.b16 %v118
  %v178 = vunpack.c.l.b16 %v119
  %v179 = vunpack.c.h.b16 %v119
  %v180 = vunpack.c.l.b16 %v120
  %v181 = vunpack.c.h.b16 %v120
  %v182 = vunpack.c.l.b16 %v121
  %v183 = vunpack.c.h.b16 %v121
  %v184 = vunpack.c.l.b16 %v122
  %v185 = vunpack.c.h.b16 %v122
  %v186 = vunpack.c.l.b16 %v123
  %v187 = vunpack.c.h.b16 %v123
  %v188 = vunpack.c.l.b16 %v124
  %v189 = vunpack.c.h.b16 %v124
  %v190 = vunpack.c.l.b16 %v125
  %v191 = vunpack.c.h.b16 %v125
  %v192 = vunpack.c.l.b16 %v126
  %v193 = vunpack.c.h.b16 %v126
  %v194 = vunpack.c.l.b16 %v127
  %v195 = vunpack.c.h.b16 %v127
  %v196 = vunpack.c.l.b16 %v128
  %v197 = vunpack.c.h.b16 %v128
  %v198 = vunpack.c.l.b16 %v129
  %v199 = vunpack.c.h.b16 %v129
  %v200 = vunpack.c.l.b16 %v130
  %v201 = vunpack.c.h.b16 %v130
  %v202 = vunpack.c.l.b16 %v131
  %v203 = vunpack.c.h.b16 %v131
  %v204 = vunpack.c.l.b16 %v132
  %v205 = vunpack.c.h.b16 %v132
  %v206 = vunpack.c.l.b16 %v133
  %v207 = vunpack.c.h.b16 %v133
  %v208 = vunpack.c.l.b16 %v134
  %v209 = vunpack.c.h.b16 %v134
  %v210 = vunpack.c.l.b16 %v135
  %v211 = vunpack.c.h.b16 %v135
  %v212 = vunpack.c.l.b16 %v136
  %v213 = vunpack.c.h.b16 %v136
  %v214 = vunpack.c.l.b16 %v137
  %v215 = vunpack.c.h.b16 %v137
  %v216 = vpack.c.b16 %v174, %v172
  %v217 = vpack.c.b16 %v175, %v173
  %v218 = vpack.c.b16 %v178, %v176
  %v219 = vpack.c.b16 %v179, %v177
  %v220 = vpack.c.b16 %v182, %v180
  %v221 = vpack.c.b16 %v183, %v181
  %v222 = vpack.c.b16 %v186, %v184
  %v223 = vpack.c.b16 %v187, %v185
  %v224 = vpack.c.b16 %v190, %v188
  %v225 = vpack.c.b16 %v191, %v189
  %v226 = vpack.c.b16 %v194, %v192
  %v227 = vpack.c.b16 %v195, %v193
  %v228 = vpack.c.b16 %v198, %v196
  %v229 = vpack.c.b16 %v199, %v197
  %v230 = vpack.c.b16 %v202, %v200
  %v231 = vpack.c.b16 %v203, %v201
  %v232 = vpack.c.b16 %v206, %v204
  %v233 = vpack.c.b16 %v207, %v205
  %v234 = vpack.c.b16 %v210, %v208
  %v235 = vpack.c.b16 %v211, %v209
  %v236 = vpack.c.b16 %v214, %v212
  %v237 = vpack.c.b16 %v215, %v213
  %vm258 = vcmask 334848
  %v260 = vsel %vm258, %v115, 0
  %vm262 = vcmask 1043456
  %vm263 = vcmask 1044480
  %v264 = vsel %vm262, 4294967295, 65535
  %v265 = vsel %vm263, %v264, 0
  %v267 = vand.u32 %v236, %v265
  %v270 = vand.u32 %v237, %v265
  %272 = vmatprep.subr.bf16.mxu0 %v217
  %273 = vmatpush1.bf16.msra.mxu0 %v216
  %274 = vmatprep.subr.bf16.mxu0 %v219
  %275 = vmatpush1.bf16.msra.mxu0 %v218
  %276 = vmatprep.subr.bf16.mxu0 %v221
  %277 = vmatpush1.bf16.msra.mxu0 %v220
  %278 = vmatprep.subr.bf16.mxu0 %v223
  %279 = vmatpush1.bf16.msra.mxu0 %v222
  %280 = vmatprep.subr.bf16.mxu0 %v225
  %281 = vmatpush1.bf16.msra.mxu0 %v224
  %282 = vmatprep.subr.bf16.mxu0 %v227
  %283 = vmatpush1.bf16.msra.mxu0 %v226
  %284 = vmatprep.subr.bf16.mxu0 %v229
  %285 = vmatpush1.bf16.msra.mxu0 %v228
  %286 = vmatprep.subr.bf16.mxu0 %v231
  %287 = vmatpush1.bf16.msra.mxu0 %v230
  %288 = vmatprep.subr.bf16.mxu0 %v233
  %289 = vmatpush1.bf16.msra.mxu0 %v232
  %290 = vmatprep.subr.bf16.mxu0 %v235
  %291 = vmatpush1.bf16.msra.mxu0 %v234
  %292 = vmatprep.subr.bf16.mxu0 %v270
  %293 = vmatpush1.bf16.msra.mxu0 %v267
  %294 = vmatprep.subr.bf16.mxu0 0
  %295 = vmatpush1.bf16.msra.mxu0 0
  %296 = vmatprep.subr.bf16.mxu0 0
  %297 = vmatpush1.bf16.msra.mxu0 0
  %298 = vmatprep.subr.bf16.mxu0 0
  %299 = vmatpush1.bf16.msra.mxu0 0
  %300 = vmatprep.subr.bf16.mxu0 0
  %301 = vmatpush1.bf16.msra.mxu0 0
  %302 = vmatprep.subr.bf16.mxu0 0
  %303 = vmatpush1.bf16.msra.mxu0 0
  %304 = vmatprep.mubr.bf16.mxu0 %v260
  %305 = vmatmul.mubr.bf16.gmra.mrb[0].mxu0 %v114
  %v306 = vpop.f32.mrb[0].mxu0
  %v307 = vadd.f32 %v143, %v306
  %v308 = vpop.f32.mrb[0].mxu0
  %v309 = vadd.f32 %v147, %v308
  %v310 = vpop.f32.mrb[0].mxu0
  %v311 = vadd.f32 %v143, %v310
  %v312 = vpop.f32.mrb[0].mxu0
  %v313 = vadd.f32 %v147, %v312
  %314 = vdwg.mxu0
  %v315 = vmul.f32 %v307, 0.5
  %v316 = vmul.f32 %v309, 0.5
  %v317 = vmul.f32 %v311, 0.5
  %v318 = vmul.f32 %v313, 0.5
  %v319 = vmul.f32 %v307, 0.70710677
  %v320 = vmul.f32 %v309, 0.70710677
  %v321 = vmul.f32 %v311, 0.70710677
  %v322 = vmul.f32 %v313, 0.70710677
  %v323 = verf.f32.pop %v319
  %v324 = verf.f32.pop %v320
  %v325 = verf.f32.pop %v321
  %v326 = verf.f32.pop %v322
  %v327 = vadd.f32 %v323, 1.0
  %v328 = vadd.f32 %v324, 1.0
  %v329 = vadd.f32 %v325, 1.0
  %v330 = vadd.f32 %v326, 1.0
  %v331 = vmul.f32 %v315, %v327
  %v332 = vmul.f32 %v316, %v328
  %v333 = vmul.f32 %v317, %v329
  %v334 = vmul.f32 %v318, %v330
  %v335 = vpack.c.bf16 %v333, %v331
  %v336 = vpack.c.bf16 %v334, %v332
  %v337 = vld [vmem:[%s4] sm:$0xf]
  %v338 = vld [vmem:[%s4 + $0x4] sm:$0xf]
  %v339 = vld [vmem:[%s4 + $0x8] sm:$0xf]
  %v340 = vld [vmem:[%s4 + $0xc] sm:$0xf]
  %v341 = vld [vmem:[%s4 + $0x10] sm:$0xf]
  %v342 = vld [vmem:[%s4 + $0x14] sm:$0xf]
  %v343 = vld [vmem:[%s4 + $0x18] sm:$0xf]
  %v344 = vld [vmem:[%s4 + $0x1c] sm:$0xf]
  %v345 = vld [vmem:[%s4 + $0x20] sm:$0xf]
  %v346 = vld [vmem:[%s4 + $0x24] sm:$0xf]
  %v347 = vld [vmem:[%s4 + $0x28] sm:$0xf]
  %v348 = vld [vmem:[%s4 + $0x2c] sm:$0xf]
  %v349 = vld [vmem:[%s4 + $0x30] sm:$0xf]
  %v350 = vld [vmem:[%s4 + $0x34] sm:$0xf]
  %v351 = vld [vmem:[%s4 + $0x38] sm:$0xf]
  %v352 = vld [vmem:[%s4 + $0x3c] sm:$0xf]
  %v353 = vld [vmem:[%s4 + $0x40] sm:$0xf]
  %v354 = vld [vmem:[%s4 + $0x44] sm:$0xf]
  %v355 = vld [vmem:[%s4 + $0x48] sm:$0xf]
  %v356 = vld [vmem:[%s4 + $0x4c] sm:$0xf]
  %v357 = vld [vmem:[%s4 + $0x50] sm:$0xf]
  %v358 = vld [vmem:[%s4 + $0x54] sm:$0xf]
  %v359 = vld [vmem:[%s4 + $0x58] sm:$0xf]
  %v360 = vld [vmem:[%s4 + $0x5c] sm:$0xf]
  %v361 = vld [vmem:[%s5] sm:$0x1]
  %v363 = vlaneseq
  %v364 = vshrl.u32 %v363, 7
  %v365 = vsub.s32 0, %v364
  %v366 = vrot.slane %v361, %v365
  %v392 = vunpack.c.l.b16 %v337
  %v393 = vunpack.c.l.b16 %v338
  %v394 = vunpack.c.l.b16 %v339
  %v395 = vunpack.c.l.b16 %v340
  %v396 = vunpack.c.l.b16 %v341
  %v397 = vunpack.c.l.b16 %v342
  %v398 = vunpack.c.l.b16 %v343
  %v399 = vunpack.c.l.b16 %v344
  %v400 = vunpack.c.l.b16 %v345
  %v401 = vunpack.c.l.b16 %v346
  %v402 = vunpack.c.l.b16 %v347
  %v403 = vunpack.c.l.b16 %v348
  %v404 = vunpack.c.l.b16 %v349
  %v405 = vunpack.c.l.b16 %v350
  %v406 = vunpack.c.l.b16 %v351
  %v407 = vunpack.c.l.b16 %v352
  %v408 = vunpack.c.l.b16 %v353
  %v409 = vunpack.c.l.b16 %v354
  %v410 = vunpack.c.l.b16 %v355
  %v411 = vunpack.c.l.b16 %v356
  %v412 = vunpack.c.l.b16 %v357
  %v413 = vunpack.c.l.b16 %v358
  %v414 = vunpack.c.l.b16 %v359
  %v415 = vunpack.c.l.b16 %v360
  %v416 = vpack.c.b16 %v393, %v392
  %v417 = vpack.c.b16 %v395, %v394
  %v418 = vpack.c.b16 %v397, %v396
  %v419 = vpack.c.b16 %v399, %v398
  %v420 = vpack.c.b16 %v401, %v400
  %v421 = vpack.c.b16 %v403, %v402
  %v422 = vpack.c.b16 %v405, %v404
  %v423 = vpack.c.b16 %v407, %v406
  %v424 = vpack.c.b16 %v409, %v408
  %v425 = vpack.c.b16 %v411, %v410
  %v426 = vpack.c.b16 %v413, %v412
  %v427 = vpack.c.b16 %v415, %v414
  %vm440 = vcmask 523264
  %v442 = vsel %vm440, %v336, 0
  %444 = vmatprep.subr.bf16.mxu0 0
  %445 = vmatpush1.bf16.msra.mxu0 %v416
  %446 = vmatprep.subr.bf16.mxu0 0
  %447 = vmatpush1.bf16.msra.mxu0 %v417
  %448 = vmatprep.subr.bf16.mxu0 0
  %449 = vmatpush1.bf16.msra.mxu0 %v418
  %450 = vmatprep.subr.bf16.mxu0 0
  %451 = vmatpush1.bf16.msra.mxu0 %v419
  %452 = vmatprep.subr.bf16.mxu0 0
  %453 = vmatpush1.bf16.msra.mxu0 %v420
  %454 = vmatprep.subr.bf16.mxu0 0
  %455 = vmatpush1.bf16.msra.mxu0 %v421
  %456 = vmatprep.subr.bf16.mxu0 0
  %457 = vmatpush1.bf16.msra.mxu0 %v422
  %458 = vmatprep.subr.bf16.mxu0 0
  %459 = vmatpush1.bf16.msra.mxu0 %v423
  %460 = vmatprep.subr.bf16.mxu0 0
  %461 = vmatpush1.bf16.msra.mxu0 %v424
  %462 = vmatprep.subr.bf16.mxu0 0
  %463 = vmatpush1.bf16.msra.mxu0 %v425
  %464 = vmatprep.subr.bf16.mxu0 0
  %465 = vmatpush1.bf16.msra.mxu0 %v426
  %466 = vmatprep.subr.bf16.mxu0 0
  %467 = vmatpush1.bf16.msra.mxu0 %v427
  %468 = vmatprep.subr.bf16.mxu0 0
  %469 = vmatpush1.bf16.msra.mxu0 0
  %470 = vmatprep.subr.bf16.mxu0 0
  %471 = vmatpush1.bf16.msra.mxu0 0
  %472 = vmatprep.subr.bf16.mxu0 0
  %473 = vmatpush1.bf16.msra.mxu0 0
  %474 = vmatprep.subr.bf16.mxu0 0
  %475 = vmatpush1.bf16.msra.mxu0 0
  %476 = vmatprep.mubr.bf16.mxu0 %v442
  %477 = vmatmul.mubr.bf16.gmra.mrb[0].mxu0 %v335
  %v478 = vpop.f32.mrb[0].mxu0
  %v479 = vadd.f32 %v366, %v478
  %v480 = vpop.f32.mrb[0].mxu0
  %v481 = vpop.f32.mrb[0].mxu0
  %v482 = vadd.f32 %v366, %v481
  %v483 = vpop.f32.mrb[0].mxu0
  %484 = vdwg.mxu0
  %485 = vst [vmem:[%s6] sm:$0xff] %v479
  %486 = vst [vmem:[%s6 + $0x8] sm:$0xff] %v482
  // Predicated region
  $region26: #{_forward.1} parent=0 // pred_check
    _
  $region27: #{_forward.1} parent=0 // pred_check_branch
    %488 = sbr.rel (0) target = $region29
  $region28: #{_forward.1} parent=0 // pred_region
    _
  $region29: #{_forward.1} parent=0 // pred_fallthru
    _
  // Predicated region
  $region30: #{_forward.1} parent=0 // pred_check
    _
  $region31: #{_forward.1} parent=0 // pred_check_branch
    %490 = sbr.rel (0) target = $region33
  $region32: #{_forward.1} parent=0 // pred_region
    _
  $region33: #{_forward.1} parent=0 // pred_fallthru
    _

</llo_original>
